<compile_context>
chip_gen: v7x
topology: tpu7x:2x2x1
jax: 0.10.0
libtpu: 0.0.40
codegen_flags: <defaults>
</compile_context>

<pallas_src>
import math

import jax
import jax.numpy as jnp
from jax.experimental import pallas as pl
from jax.experimental.pallas import tpu as pltpu

_H1 = 512
_H2 = 256
_H1_CHUNK = 128  # chunk of the hidden-512 axis kept live at a time


def _round_up(x, m):
    return (x + m - 1) // m * m


def _fc_kernel(xd_ref, xp_ref, w1_ref, b1_ref, w2_ref, b2_ref,
               w3_ref, b3_ref, o_ref):
    cdt = w1_ref.dtype  # MXU operand dtype (bf16); accumulation stays f32.

    # Fused concat on the lane axis -> single (tb, 2D) operand for layer 1.
    x = jnp.concatenate([xd_ref[...], xp_ref[...]], axis=-1).astype(cdt)
    tb = x.shape[0]

    # Layers 1+2 fused, chunked over H1 so the live f32 slab stays (tb, 128):
    #   h1_c = relu(x @ W1[:, c] + b1[c]);  h2 += h1_c @ W2[c, :]
    h2 = jnp.zeros((tb, _H2), jnp.float32)
    for c in range(_H1 // _H1_CHUNK):           # static unrolled (4 iters)
        lo = c * _H1_CHUNK
        hi = lo + _H1_CHUNK
        h1c = jnp.dot(x, w1_ref[:, lo:hi], preferred_element_type=jnp.float32)
        h1c = jnp.maximum(h1c + b1_ref[:, lo:hi], 0.0)
        # Dropout -> identity in eval mode.
        # TODO(synk): training-mode dropout would need pltpu.prng_seed/prng_random_bits masking.
        h2 = h2 + jnp.dot(h1c.astype(cdt), w2_ref[lo:hi, :],
                          preferred_element_type=jnp.float32)

    h2 = jnp.maximum(h2 + b2_ref[...], 0.0)

    # Output layer: (tb, 256) @ (256, n_output)
    out = jnp.dot(h2.astype(cdt), w3_ref[...], preferred_element_type=jnp.float32)
    o_ref[...] = (out + b3_ref[...]).astype(o_ref.dtype)


def prepare_fc_params(params, compute_dtype=jnp.bfloat16):
    """One-time preprocessing: cast weights to bf16 (MXU-native), biases f32."""
    return dict(
        w1=params["w1"].astype(compute_dtype),
        b1=params["b1"].reshape(1, -1).astype(jnp.float32),
        w2=params["w2"].astype(compute_dtype),
        b2=params["b2"].reshape(1, -1).astype(jnp.float32),
        w3=params["w3"].astype(compute_dtype),
        b3=params["b3"].reshape(1, -1).astype(jnp.float32),
        n_output=params["w3"].shape[1],
    )


def fc_forward(drug_features, protein_features, prepared, *, block_b=512):
    """Fused 3-layer MLP; concat folded into the first matmul inside the kernel."""
    B, D = drug_features.shape
    n_output = prepared["n_output"]

    # Batch tile: as large as block_b allows (amortizes ~0.35us/step overhead),
    # sublane-aligned, and capped so the grid has >= 2 steps when B permits
    # (keeps both TensorCores busy on v7x).
    tb = min(block_b, _round_up(max(B, 1), 8))
    if B > 8:
        tb = min(tb, _round_up(pl.cdiv(B, 2), 8))
    grid = (pl.cdiv(B, tb),)

    act_spec = pl.BlockSpec((tb, D), lambda i: (i, 0))
    # Weights/biases: constant block index -> VMEM-resident across all tiles.
    res_spec = lambda a: pl.BlockSpec(a.shape, lambda i: (0, 0))

    flops = 2 * B * (2 * D * _H1 + _H1 * _H2 + _H2 * n_output)
    bytes_accessed = (
        drug_features.size * drug_features.dtype.itemsize
        + protein_features.size * protein_features.dtype.itemsize
        + sum(prepared[k].size * prepared[k].dtype.itemsize
              for k in ("w1", "b1", "w2", "b2", "w3", "b3"))
        + B * n_output * jnp.dtype(drug_features.dtype).itemsize
    )

    return pl.pallas_call(
        _fc_kernel,
        out_shape=jax.ShapeDtypeStruct((B, n_output), drug_features.dtype),
        grid=grid,
        in_specs=[
            act_spec,                   # drug features    (streamed)
            act_spec,                   # protein features (streamed)
            res_spec(prepared["w1"]),   # resident weights / biases
            res_spec(prepared["b1"]),
            res_spec(prepared["w2"]),
            res_spec(prepared["b2"]),
            res_spec(prepared["w3"]),
            res_spec(prepared["b3"]),
        ],
        out_specs=pl.BlockSpec((tb, n_output), lambda i: (i, 0)),
        compiler_params=pltpu.CompilerParams(
            dimension_semantics=("parallel",)),
        cost_estimate=pl.CostEstimate(
            flops=flops, transcendentals=0, bytes_accessed=bytes_accessed),
    )(drug_features, protein_features,
      prepared["w1"], prepared["b1"],
      prepared["w2"], prepared["b2"],
      prepared["w3"], prepared["b3"])


def init_fc_params(key, output_dim, n_output, dtype=jnp.float32):
    """Deterministic init matching nn.Linear default: U(-1/sqrt(fan_in), 1/sqrt(fan_in))."""
    dims = [(output_dim * 2, _H1), (_H1, _H2), (_H2, n_output)]
    params = {}
    for idx, (fan_in, fan_out) in enumerate(dims, start=1):
        key, kw, kb = jax.random.split(key, 3)
        bound = 1.0 / math.sqrt(fan_in)
        params[f"w{idx}"] = jax.random.uniform(
            kw, (fan_in, fan_out), dtype=dtype, minval=-bound, maxval=bound
        )
        params[f"b{idx}"] = jax.random.uniform(
            kb, (fan_out,), dtype=dtype, minval=-bound, maxval=bound
        )
    return params


def _reference(drug, protein, params):
    """Pure-JAX reference with the same bf16 weights / bf16 matmul operands."""
    bf16 = jnp.bfloat16
    x = jnp.concatenate([drug, protein], axis=1).astype(bf16)
    h1 = jnp.maximum(
        jnp.dot(x, params["w1"].astype(bf16),
                preferred_element_type=jnp.float32) + params["b1"], 0.0)
    h2 = jnp.maximum(
        jnp.dot(h1.astype(bf16), params["w2"].astype(bf16),
                preferred_element_type=jnp.float32) + params["b2"], 0.0)
    return jnp.dot(h2.astype(bf16), params["w3"].astype(bf16),
                   preferred_element_type=jnp.float32) + params["b3"]


if __name__ == "__main__":
    output_dim = 32     # -> concatenated feature dim = 64
    n_output = 8

    key = jax.random.PRNGKey(0)
    kp, kd, kpr = jax.random.split(key, 3)

    params = init_fc_params(kp, output_dim, n_output)
    prepared = prepare_fc_params(params)

    # Primary small-shape run (batch=2, single grid step).
    drug = jax.random.normal(kd, (2, output_dim), dtype=jnp.float32)
    protein = jax.random.normal(kpr, (2, output_dim), dtype=jnp.float32)
    out = fc_forward(drug, protein, prepared)
    jax.block_until_ready(out)
    ref = _reference(drug, protein, params)
    assert out.shape == (2, n_output)
    assert jnp.allclose(out, ref, atol=2e-2, rtol=2e-2), (out, ref)

    # Second run exercising grid >= 2 and a partial last batch tile.
    kd2, kpr2 = jax.random.split(jax.random.PRNGKey(1))
    drug2 = jax.random.normal(kd2, (20, output_dim), dtype=jnp.float32)
    protein2 = jax.random.normal(kpr2, (20, output_dim), dtype=jnp.float32)
    out2 = fc_forward(drug2, protein2, prepared)
    jax.block_until_ready(out2)
    ref2 = _reference(drug2, protein2, params)
    assert out2.shape == (20, n_output)
    assert jnp.allclose(out2, ref2, atol=2e-2, rtol=2e-2), (out2, ref2)

    print("KERNEL_OK")
</pallas_src>

<mosaic_0001>
module attributes {stable_mosaic.version = 11 : i64} {
  func.func @_fc_kernel(%arg0: i32, %arg1: memref<8x32xf32, #tpu.memory_space<vmem>>, %arg2: memref<8x32xf32, #tpu.memory_space<vmem>>, %arg3: memref<64x512xbf16, #tpu.memory_space<vmem>>, %arg4: memref<1x512xf32, #tpu.memory_space<vmem>>, %arg5: memref<512x256xbf16, #tpu.memory_space<vmem>>, %arg6: memref<1x256xf32, #tpu.memory_space<vmem>>, %arg7: memref<256x8xbf16, #tpu.memory_space<vmem>>, %arg8: memref<1x8xf32, #tpu.memory_space<vmem>>, %arg9: memref<8x8xf32, #tpu.memory_space<vmem>>) attributes {dimension_semantics = [#tpu.dimension_semantics<parallel>], iteration_bounds = array<i64: 1>, scalar_prefetch = 0 : i64, scratch_operands = 0 : i64, tpu.core_type = #tpu.core_type<tc>, window_params = [{transform_indices = @transform_0, window_bounds = array<i64: 8, 32>}, {transform_indices = @transform_1, window_bounds = array<i64: 8, 32>}, {pipeline_mode = #tpu.pipeline_mode<synchronous>, transform_indices = @transform_2, window_bounds = array<i64: 64, 512>}, {pipeline_mode = #tpu.pipeline_mode<synchronous>, transform_indices = @transform_3, window_bounds = array<i64: 1, 512>}, {pipeline_mode = #tpu.pipeline_mode<synchronous>, transform_indices = @transform_4, window_bounds = array<i64: 512, 256>}, {pipeline_mode = #tpu.pipeline_mode<synchronous>, transform_indices = @transform_5, window_bounds = array<i64: 1, 256>}, {pipeline_mode = #tpu.pipeline_mode<synchronous>, transform_indices = @transform_6, window_bounds = array<i64: 256, 8>}, {pipeline_mode = #tpu.pipeline_mode<synchronous>, transform_indices = @transform_7, window_bounds = array<i64: 1, 8>}, {transform_indices = @transform_8, window_bounds = array<i64: 8, 8>}]} {
    %c0 = arith.constant 0 : index
    %c0_0 = arith.constant 0 : index
    %0 = vector.load %arg1[%c0, %c0_0] : memref<8x32xf32, #tpu.memory_space<vmem>>, vector<8x32xf32>
    %c0_1 = arith.constant 0 : index
    %c0_2 = arith.constant 0 : index
    %1 = vector.load %arg2[%c0_1, %c0_2] : memref<8x32xf32, #tpu.memory_space<vmem>>, vector<8x32xf32>
    %2 = tpu.concatenate %0, %1 in 1 : vector<8x32xf32>, vector<8x32xf32> -> vector<8x64xf32>
    %3 = arith.truncf %2 : vector<8x64xf32> to vector<8x64xbf16>
    %cst = arith.constant 0.000000e+00 : f32
    %4 = vector.broadcast %cst : f32 to vector<8x256xf32>
    %c0_3 = arith.constant 0 : index
    %c0_4 = arith.constant 0 : index
    %5 = vector.load %arg3[%c0_3, %c0_4] : memref<64x512xbf16, #tpu.memory_space<vmem>>, vector<64x128xbf16>
    %cst_5 = arith.constant dense<0.000000e+00> : vector<8x128xf32>
    %6 = tpu.matmul %3, %5, %cst_5 {dimension_numbers = #tpu.dot_dimension_numbers<[1], [0], [0], [1], [0, 0, 1, 1], [], []>} : vector<8x64xbf16>, vector<64x128xbf16>, vector<8x128xf32> -> vector<8x128xf32>
    %c0_6 = arith.constant 0 : index
    %c0_7 = arith.constant 0 : index
    %7 = vector.load %arg4[%c0_6, %c0_7] : memref<1x512xf32, #tpu.memory_space<vmem>>, vector<1x128xf32>
    %8 = vector.broadcast %7 : vector<1x128xf32> to vector<8x128xf32>
    %9 = arith.addf %6, %8 : vector<8x128xf32>
    %cst_8 = arith.constant 0.000000e+00 : f32
    %10 = vector.broadcast %cst_8 : f32 to vector<8x128xf32>
    %11 = arith.maximumf %9, %10 : vector<8x128xf32>
    %12 = arith.truncf %11 : vector<8x128xf32> to vector<8x128xbf16>
    %c0_9 = arith.constant 0 : index
    %c0_10 = arith.constant 0 : index
    %13 = vector.load %arg5[%c0_9, %c0_10] : memref<512x256xbf16, #tpu.memory_space<vmem>>, vector<128x256xbf16>
    %cst_11 = arith.constant dense<0.000000e+00> : vector<8x256xf32>
    %14 = tpu.matmul %12, %13, %cst_11 {dimension_numbers = #tpu.dot_dimension_numbers<[1], [0], [0], [1], [0, 0, 1, 1], [], []>} : vector<8x128xbf16>, vector<128x256xbf16>, vector<8x256xf32> -> vector<8x256xf32>
    %15 = arith.addf %4, %14 : vector<8x256xf32>
    %c0_12 = arith.constant 0 : index
    %c128 = arith.constant 128 : index
    %16 = vector.load %arg3[%c0_12, %c128] : memref<64x512xbf16, #tpu.memory_space<vmem>>, vector<64x128xbf16>
    %cst_13 = arith.constant dense<0.000000e+00> : vector<8x128xf32>
    %17 = tpu.matmul %3, %16, %cst_13 {dimension_numbers = #tpu.dot_dimension_numbers<[1], [0], [0], [1], [0, 0, 1, 1], [], []>} : vector<8x64xbf16>, vector<64x128xbf16>, vector<8x128xf32> -> vector<8x128xf32>
    %c0_14 = arith.constant 0 : index
    %c128_15 = arith.constant 128 : index
    %18 = vector.load %arg4[%c0_14, %c128_15] : memref<1x512xf32, #tpu.memory_space<vmem>>, vector<1x128xf32>
    %19 = vector.broadcast %18 : vector<1x128xf32> to vector<8x128xf32>
    %20 = arith.addf %17, %19 : vector<8x128xf32>
    %cst_16 = arith.constant 0.000000e+00 : f32
    %21 = vector.broadcast %cst_16 : f32 to vector<8x128xf32>
    %22 = arith.maximumf %20, %21 : vector<8x128xf32>
    %23 = arith.truncf %22 : vector<8x128xf32> to vector<8x128xbf16>
    %c128_17 = arith.constant 128 : index
    %c0_18 = arith.constant 0 : index
    %24 = vector.load %arg5[%c128_17, %c0_18] : memref<512x256xbf16, #tpu.memory_space<vmem>>, vector<128x256xbf16>
    %cst_19 = arith.constant dense<0.000000e+00> : vector<8x256xf32>
    %25 = tpu.matmul %23, %24, %cst_19 {dimension_numbers = #tpu.dot_dimension_numbers<[1], [0], [0], [1], [0, 0, 1, 1], [], []>} : vector<8x128xbf16>, vector<128x256xbf16>, vector<8x256xf32> -> vector<8x256xf32>
    %26 = arith.addf %15, %25 : vector<8x256xf32>
    %c0_20 = arith.constant 0 : index
    %c256 = arith.constant 256 : index
    %27 = vector.load %arg3[%c0_20, %c256] : memref<64x512xbf16, #tpu.memory_space<vmem>>, vector<64x128xbf16>
    %cst_21 = arith.constant dense<0.000000e+00> : vector<8x128xf32>
    %28 = tpu.matmul %3, %27, %cst_21 {dimension_numbers = #tpu.dot_dimension_numbers<[1], [0], [0], [1], [0, 0, 1, 1], [], []>} : vector<8x64xbf16>, vector<64x128xbf16>, vector<8x128xf32> -> vector<8x128xf32>
    %c0_22 = arith.constant 0 : index
    %c256_23 = arith.constant 256 : index
    %29 = vector.load %arg4[%c0_22, %c256_23] : memref<1x512xf32, #tpu.memory_space<vmem>>, vector<1x128xf32>
    %30 = vector.broadcast %29 : vector<1x128xf32> to vector<8x128xf32>
    %31 = arith.addf %28, %30 : vector<8x128xf32>
    %cst_24 = arith.constant 0.000000e+00 : f32
    %32 = vector.broadcast %cst_24 : f32 to vector<8x128xf32>
    %33 = arith.maximumf %31, %32 : vector<8x128xf32>
    %34 = arith.truncf %33 : vector<8x128xf32> to vector<8x128xbf16>
    %c256_25 = arith.constant 256 : index
    %c0_26 = arith.constant 0 : index
    %35 = vector.load %arg5[%c256_25, %c0_26] : memref<512x256xbf16, #tpu.memory_space<vmem>>, vector<128x256xbf16>
    %cst_27 = arith.constant dense<0.000000e+00> : vector<8x256xf32>
    %36 = tpu.matmul %34, %35, %cst_27 {dimension_numbers = #tpu.dot_dimension_numbers<[1], [0], [0], [1], [0, 0, 1, 1], [], []>} : vector<8x128xbf16>, vector<128x256xbf16>, vector<8x256xf32> -> vector<8x256xf32>
    %37 = arith.addf %26, %36 : vector<8x256xf32>
    %c0_28 = arith.constant 0 : index
    %c384 = arith.constant 384 : index
    %38 = vector.load %arg3[%c0_28, %c384] : memref<64x512xbf16, #tpu.memory_space<vmem>>, vector<64x128xbf16>
    %cst_29 = arith.constant dense<0.000000e+00> : vector<8x128xf32>
    %39 = tpu.matmul %3, %38, %cst_29 {dimension_numbers = #tpu.dot_dimension_numbers<[1], [0], [0], [1], [0, 0, 1, 1], [], []>} : vector<8x64xbf16>, vector<64x128xbf16>, vector<8x128xf32> -> vector<8x128xf32>
    %c0_30 = arith.constant 0 : index
    %c384_31 = arith.constant 384 : index
    %40 = vector.load %arg4[%c0_30, %c384_31] : memref<1x512xf32, #tpu.memory_space<vmem>>, vector<1x128xf32>
    %41 = vector.broadcast %40 : vector<1x128xf32> to vector<8x128xf32>
    %42 = arith.addf %39, %41 : vector<8x128xf32>
    %cst_32 = arith.constant 0.000000e+00 : f32
    %43 = vector.broadcast %cst_32 : f32 to vector<8x128xf32>
    %44 = arith.maximumf %42, %43 : vector<8x128xf32>
    %45 = arith.truncf %44 : vector<8x128xf32> to vector<8x128xbf16>
    %c384_33 = arith.constant 384 : index
    %c0_34 = arith.constant 0 : index
    %46 = vector.load %arg5[%c384_33, %c0_34] : memref<512x256xbf16, #tpu.memory_space<vmem>>, vector<128x256xbf16>
    %cst_35 = arith.constant dense<0.000000e+00> : vector<8x256xf32>
    %47 = tpu.matmul %45, %46, %cst_35 {dimension_numbers = #tpu.dot_dimension_numbers<[1], [0], [0], [1], [0, 0, 1, 1], [], []>} : vector<8x128xbf16>, vector<128x256xbf16>, vector<8x256xf32> -> vector<8x256xf32>
    %48 = arith.addf %37, %47 : vector<8x256xf32>
    %c0_36 = arith.constant 0 : index
    %c0_37 = arith.constant 0 : index
    %49 = vector.load %arg6[%c0_36, %c0_37] : memref<1x256xf32, #tpu.memory_space<vmem>>, vector<1x256xf32>
    %50 = vector.broadcast %49 : vector<1x256xf32> to vector<8x256xf32>
    %51 = arith.addf %48, %50 : vector<8x256xf32>
    %cst_38 = arith.constant 0.000000e+00 : f32
    %52 = vector.broadcast %cst_38 : f32 to vector<8x256xf32>
    %53 = arith.maximumf %51, %52 : vector<8x256xf32>
    %54 = arith.truncf %53 : vector<8x256xf32> to vector<8x256xbf16>
    %c0_39 = arith.constant 0 : index
    %c0_40 = arith.constant 0 : index
    %55 = vector.load %arg7[%c0_39, %c0_40] : memref<256x8xbf16, #tpu.memory_space<vmem>>, vector<256x8xbf16>
    %cst_41 = arith.constant dense<0.000000e+00> : vector<8x8xf32>
    %56 = tpu.matmul %54, %55, %cst_41 {dimension_numbers = #tpu.dot_dimension_numbers<[1], [0], [0], [1], [0, 0, 1, 1], [], []>} : vector<8x256xbf16>, vector<256x8xbf16>, vector<8x8xf32> -> vector<8x8xf32>
    %c0_42 = arith.constant 0 : index
    %c0_43 = arith.constant 0 : index
    %57 = vector.load %arg8[%c0_42, %c0_43] : memref<1x8xf32, #tpu.memory_space<vmem>>, vector<1x8xf32>
    %58 = vector.broadcast %57 : vector<1x8xf32> to vector<8x8xf32>
    %59 = arith.addf %56, %58 : vector<8x8xf32>
    %c0_44 = arith.constant 0 : index
    %c0_45 = arith.constant 0 : index
    %60 = vector.load %arg9[%c0_44, %c0_45] : memref<8x8xf32, #tpu.memory_space<vmem>>, vector<8x8xf32>
    tpu.vector_store %arg9[%c0_44, %c0_45], %59 {strides = array<i32>} : memref<8x8xf32, #tpu.memory_space<vmem>>, vector<8x8xf32>,
    return
  }
  func.func @transform_0(%arg0: i32) -> (i32, i32) {
    %c0_i32 = arith.constant 0 : i32
    %c0_i32_0 = arith.constant 0 : i32
    return %arg0, %c0_i32 : i32, i32
  }
  func.func @transform_1(%arg0: i32) -> (i32, i32) {
    %c0_i32 = arith.constant 0 : i32
    %c0_i32_0 = arith.constant 0 : i32
    return %arg0, %c0_i32 : i32, i32
  }
  func.func @transform_2(%arg0: i32) -> (i32, i32) {
    %c0_i32 = arith.constant 0 : i32
    %c0_i32_0 = arith.constant 0 : i32
    %c0_i32_1 = arith.constant 0 : i32
    return %c0_i32, %c0_i32_0 : i32, i32
  }
  func.func @transform_3(%arg0: i32) -> (i32, i32) {
    %c0_i32 = arith.constant 0 : i32
    %c0_i32_0 = arith.constant 0 : i32
    %c0_i32_1 = arith.constant 0 : i32
    return %c0_i32, %c0_i32_0 : i32, i32
  }
  func.func @transform_4(%arg0: i32) -> (i32, i32) {
    %c0_i32 = arith.constant 0 : i32
    %c0_i32_0 = arith.constant 0 : i32
    %c0_i32_1 = arith.constant 0 : i32
    return %c0_i32, %c0_i32_0 : i32, i32
  }
  func.func @transform_5(%arg0: i32) -> (i32, i32) {
    %c0_i32 = arith.constant 0 : i32
    %c0_i32_0 = arith.constant 0 : i32
    %c0_i32_1 = arith.constant 0 : i32
    return %c0_i32, %c0_i32_0 : i32, i32
  }
  func.func @transform_6(%arg0: i32) -> (i32, i32) {
    %c0_i32 = arith.constant 0 : i32
    %c0_i32_0 = arith.constant 0 : i32
    %c0_i32_1 = arith.constant 0 : i32
    return %c0_i32, %c0_i32_0 : i32, i32
  }
  func.func @transform_7(%arg0: i32) -> (i32, i32) {
    %c0_i32 = arith.constant 0 : i32
    %c0_i32_0 = arith.constant 0 : i32
    %c0_i32_1 = arith.constant 0 : i32
    return %c0_i32, %c0_i32_0 : i32, i32
  }
  func.func @transform_8(%arg0: i32) -> (i32, i32) {
    %c0_i32 = arith.constant 0 : i32
    %c0_i32_0 = arith.constant 0 : i32
    return %arg0, %c0_i32 : i32, i32
  }
}

</mosaic_0001>

<llo_original>
// kernel: tpu_custom_call.1
$region0: #{tpu_custom_call.1}
  #allocation0 [shape = 'u32[]', space=smem, size = 0x4, offset = 0x4, fixed_abs, tag = 'smem constant byte address 0x4 - core index']
  #allocation1 [shape = 'u32[144,128]{1,0:T(1,128)}', space=vmem, size = 0x12000, scoped, tag = 'internal scratch']
  %s0 = inlined_call_operand.vmem [shape: f32[2,32], index: 0, kind: input, shape index: {}]
  %s1 = inlined_call_operand.vmem [shape: f32[2,32], index: 1, kind: input, shape index: {}]
  %s2 = inlined_call_operand.vmem [shape: bf16[64,512], index: 2, kind: input, shape index: {}]
  %s3 = inlined_call_operand.vmem [shape: f32[1,512], index: 3, kind: input, shape index: {}]
  %s4 = inlined_call_operand.hbm [shape: bf16[512,256], index: 4, kind: input, shape index: {}]
  %s5 = inlined_call_operand.vmem [shape: f32[1,256], index: 5, kind: input, shape index: {}]
  %s6 = inlined_call_operand.vmem [shape: bf16[256,8], index: 6, kind: input, shape index: {}]
  %s7 = inlined_call_operand.vmem [shape: f32[1,8], index: 7, kind: input, shape index: {}]
  %s8 = inlined_call_operand.hbm [shape: f32[2,8], index: 8, kind: output, shape index: {}]
  %s9 = sld [smem:[#allocation0]]
  $region46: #{tpu_custom_call.1} parent=0
    _
  %s11 = ssub.s32 1, %s9
  %s12 = scalar_select 0, %s11, %s9
  $region1: #{tpu_custom_call.1} parent=0
    #allocation2 [shape = 'u8[262144]{0}', space=vmem, size = 0x40000, scoped, tag = 'input window, operand 4, single buffered']
    #allocation3 [shape = 's32[1]{0}', space=sflag, size = 0x4, scoped, tag = 'scoped memory for tpu_custom_call.1']
    #allocation4 [shape = 's32[1]{0}', space=sflag, size = 0x4, scoped, tag = 'scoped memory for tpu_custom_call.1']
    #allocation5 [shape = 'u8[4096]{0}', space=vmem, size = 0x1000, scoped, tag = 'output window, operand 0, single buffered']
    %13 = vsyncpa [#allocation3], 0
    %14 = vsyncpa [#allocation4], 0
    // Predicated region
    $region2: #{tpu_custom_call.1} parent=1 // pred_check
      _
    $region3: #{tpu_custom_call.1} parent=1 // pred_check_branch
      %16 = sbr.rel (0) target = $region5
    $region4: #{tpu_custom_call.1} parent=1 // pred_region
      _
    $region5: #{tpu_custom_call.1} parent=1 // pred_fallthru
      _
    // Predicated region
    $region6: #{tpu_custom_call.1} parent=1 // pred_check
      _
    $region7: #{tpu_custom_call.1} parent=1 // pred_check_branch
      %18 = sbr.rel (0) target = $region9
    $region8: #{tpu_custom_call.1} parent=1 // pred_region
      _
    $region9: #{tpu_custom_call.1} parent=1 // pred_fallthru
      _
    // Predicated region
    $region10: #{tpu_custom_call.1} parent=1 // pred_check
      _
    $region11: #{tpu_custom_call.1} parent=1 // pred_check_branch
      %20 = sbr.rel (0) target = $region13
    $region12: #{tpu_custom_call.1} parent=1 // pred_region
      _
    $region13: #{tpu_custom_call.1} parent=1 // pred_fallthru
      _
    // Predicated region
    $region14: #{tpu_custom_call.1} parent=1 // pred_check
      _
    $region15: #{tpu_custom_call.1} parent=1 // pred_check_branch
      %22 = sbr.rel (0) target = $region17
    $region16: #{tpu_custom_call.1} parent=1 // pred_region
      _
    $region17: #{tpu_custom_call.1} parent=1 // pred_fallthru
      _
    // Predicated region
    $region18: #{tpu_custom_call.1} parent=1 // pred_check
      _
    $region19: #{tpu_custom_call.1} parent=1 // pred_check_branch
      %24 = sbr.rel (0) target = $region21
    $region20: #{tpu_custom_call.1} parent=1 // pred_region
      %s26 = ssub.s32 8192, 8192
      %27 = vsyncadd [#allocation3], %s26
      %s28 = sshll.u32 [#allocation2], 4
      %s29 = int_to_ptr.vmem [resolvable:$true] %s28
      %34 = dma.hbm_to_vmem [thread:$0]  %s4, 8192, %s29, [#allocation3], 128, 128, 8
    $region21: #{tpu_custom_call.1} parent=1 // pred_fallthru
      _
    // Predicated region
    $region22: #{tpu_custom_call.1} parent=1 // pred_check
      _
    $region23: #{tpu_custom_call.1} parent=1 // pred_check_branch
      %36 = sbr.rel (0) target = $region25
    $region24: #{tpu_custom_call.1} parent=1 // pred_region
      _
    $region25: #{tpu_custom_call.1} parent=1 // pred_fallthru
      _
    // Predicated region
    $region26: #{tpu_custom_call.1} parent=1 // pred_check
      _
    $region27: #{tpu_custom_call.1} parent=1 // pred_check_branch
      %38 = sbr.rel (0) target = $region29
    $region28: #{tpu_custom_call.1} parent=1 // pred_region
      _
    $region29: #{tpu_custom_call.1} parent=1 // pred_fallthru
      _
    // Predicated region
    $region30: #{tpu_custom_call.1} parent=1 // pred_check
      _
    $region31: #{tpu_custom_call.1} parent=1 // pred_check_branch
      %40 = sbr.rel (0) target = $region33
    $region32: #{tpu_custom_call.1} parent=1 // pred_region
      _
    $region33: #{tpu_custom_call.1} parent=1 // pred_fallthru
      _
    // Predicated region
    $region34: #{tpu_custom_call.1} parent=1 // pred_check
      _
    $region35: #{tpu_custom_call.1} parent=1 // pred_check_branch
      %42 = sbr.rel (0) target = $region37
    $region36: #{tpu_custom_call.1} parent=1 // pred_region
      %43 = dma.done [#allocation3], 8192
    $region37: #{tpu_custom_call.1} parent=1 // pred_fallthru
      _
    %v45 = vld [vmem:[%s0] sm:$0xff]
    %v46 = vld [vmem:[%s1] sm:$0xff]
    %48 = vrot.lane.b32.xlu0 %v46, 32
    %v49 = vpop.permute.xlu0 %48
    %vm51 = vcmask 261120
    %v52 = vsel %vm51, %v45, %v49
    %v53 = vpack.c.bf16 %v52, %v52
    %v54 = vld [vmem:[%s2] sm:$0xf]
    %v55 = vld [vmem:[%s2 + $0x10] sm:$0xf]
    %v56 = vld [vmem:[%s2 + $0x20] sm:$0xf]
    %v57 = vld [vmem:[%s2 + $0x30] sm:$0xf]
    %v58 = vld [vmem:[%s2 + $0x40] sm:$0xf]
    %v59 = vld [vmem:[%s2 + $0x50] sm:$0xf]
    %v60 = vld [vmem:[%s2 + $0x60] sm:$0xf]
    %v61 = vld [vmem:[%s2 + $0x70] sm:$0xf]
    %v62 = vld [vmem:[%s3] sm:$0x1]
    %v64 = vlaneseq
    %v65 = vshrl.u32 %v64, 7
    %v66 = vsub.s32 0, %v65
    %v67 = vrot.slane %v62, %v66
    %v77 = vunpack.c.l.b16 %v54
    %v78 = vunpack.c.l.b16 %v55
    %v79 = vunpack.c.l.b16 %v56
    %v80 = vunpack.c.l.b16 %v57
    %v81 = vunpack.c.l.b16 %v58
    %v82 = vunpack.c.l.b16 %v59
    %v83 = vunpack.c.l.b16 %v60
    %v84 = vunpack.c.l.b16 %v61
    %v85 = vpack.c.b16 %v78, %v77
    %v86 = vpack.c.b16 %v80, %v79
    %v87 = vpack.c.b16 %v82, %v81
    %v88 = vpack.c.b16 %v84, %v83
    %vm93 = vcmask 523264
    %v95 = vsel %vm93, %v53, 0
    %97 = vmatprep.subr.bf16.mxu0 0
    %98 = vmatpush1.bf16.msra.mxu0 %v85
    %99 = vmatprep.subr.bf16.mxu0 0
    %100 = vmatpush1.bf16.msra.mxu0 %v86
    %101 = vmatprep.subr.bf16.mxu0 0
    %102 = vmatpush1.bf16.msra.mxu0 %v87
    %103 = vmatprep.subr.bf16.mxu0 0
    %104 = vmatpush1.bf16.msra.mxu0 %v88
    %105 = vmatprep.subr.bf16.mxu0 0
    %106 = vmatpush1.bf16.msra.mxu0 0
    %107 = vmatprep.subr.bf16.mxu0 0
    %108 = vmatpush1.bf16.msra.mxu0 0
    %109 = vmatprep.subr.bf16.mxu0 0
    %110 = vmatpush1.bf16.msra.mxu0 0
    %111 = vmatprep.subr.bf16.mxu0 0
    %112 = vmatpush1.bf16.msra.mxu0 0
    %113 = vmatprep.subr.bf16.mxu0 0
    %114 = vmatpush1.bf16.msra.mxu0 0
    %115 = vmatprep.subr.bf16.mxu0 0
    %116 = vmatpush1.bf16.msra.mxu0 0
    %117 = vmatprep.subr.bf16.mxu0 0
    %118 = vmatpush1.bf16.msra.mxu0 0
    %119 = vmatprep.subr.bf16.mxu0 0
    %120 = vmatpush1.bf16.msra.mxu0 0
    %121 = vmatprep.subr.bf16.mxu0 0
    %122 = vmatpush1.bf16.msra.mxu0 0
    %123 = vmatprep.subr.bf16.mxu0 0
    %124 = vmatpush1.bf16.msra.mxu0 0
    %125 = vmatprep.subr.bf16.mxu0 0
    %126 = vmatpush1.bf16.msra.mxu0 0
    %127 = vmatprep.subr.bf16.mxu0 0
    %128 = vmatpush1.bf16.msra.mxu0 0
    %129 = vmatprep.mubr.bf16.mxu0 0
    %130 = vmatmul.mubr.bf16.gmra.mrb[0].mxu0 %v95
    %v131 = vpop.f32.mrb[0].mxu0
    %v132 = vadd.f32 %v67, %v131
    %v133 = vpop.f32.mrb[0].mxu0
    %v134 = vpop.f32.mrb[0].mxu0
    %v135 = vpop.f32.mrb[0].mxu0
    %136 = vdwg.mxu0
    %v137 = vmax.f32 %v132, 0.0
    %v138 = vpack.c.bf16 %v137, %v137
    %v139 = vld [vmem:[#allocation2] sm:$0xff]
    %v140 = vld [vmem:[#allocation2 + $0x8] sm:$0xff]
    %v141 = vld [vmem:[#allocation2 + $0x10] sm:$0xff]
    %v142 = vld [vmem:[#allocation2 + $0x18] sm:$0xff]
    %v143 = vld [vmem:[#allocation2 + $0x20] sm:$0xff]
    %v144 = vld [vmem:[#allocation2 + $0x28] sm:$0xff]
    %v145 = vld [vmem:[#allocation2 + $0x30] sm:$0xff]
    %v146 = vld [vmem:[#allocation2 + $0x38] sm:$0xff]
    %v147 = vld [vmem:[#allocation2 + $0x40] sm:$0xff]
    %v148 = vld [vmem:[#allocation2 + $0x48] sm:$0xff]
    %v149 = vld [vmem:[#allocation2 + $0x50] sm:$0xff]
    %v150 = vld [vmem:[#allocation2 + $0x58] sm:$0xff]
    %v151 = vld [vmem:[#allocation2 + $0x60] sm:$0xff]
    %v152 = vld [vmem:[#allocation2 + $0x68] sm:$0xff]
    %v153 = vld [vmem:[#allocation2 + $0x70] sm:$0xff]
    %v154 = vld [vmem:[#allocation2 + $0x78] sm:$0xff]
    %v155 = vld [vmem:[%s2 + $0x4] sm:$0xf]
    %v156 = vld [vmem:[%s2 + $0x14] sm:$0xf]
    %v157 = vld [vmem:[%s2 + $0x24] sm:$0xf]
    %v158 = vld [vmem:[%s2 + $0x34] sm:$0xf]
    %v159 = vld [vmem:[%s2 + $0x44] sm:$0xf]
    %v160 = vld [vmem:[%s2 + $0x54] sm:$0xf]
    %v161 = vld [vmem:[%s2 + $0x64] sm:$0xf]
    %v162 = vld [vmem:[%s2 + $0x74] sm:$0xf]
    %v163 = vld [vmem:[%s3 + $0x1] sm:$0x1]
    %v165 = vlaneseq
    %v166 = vshrl.u32 %v165, 7
    %v167 = vsub.s32 0, %v166
    %v168 = vrot.slane %v163, %v167
    %v178 = vunpack.c.l.b16 %v155
    %v179 = vunpack.c.l.b16 %v156
    %v180 = vunpack.c.l.b16 %v157
    %v181 = vunpack.c.l.b16 %v158
    %v182 = vunpack.c.l.b16 %v159
    %v183 = vunpack.c.l.b16 %v160
    %v184 = vunpack.c.l.b16 %v161
    %v185 = vunpack.c.l.b16 %v162
    %v186 = vpack.c.b16 %v179, %v178
    %v187 = vpack.c.b16 %v181, %v180
    %v188 = vpack.c.b16 %v183, %v182
    %v189 = vpack.c.b16 %v185, %v184
    %194 = vmatprep.subr.bf16.mxu0 0
    %195 = vmatpush1.bf16.msra.mxu0 %v186
    %196 = vmatprep.subr.bf16.mxu0 0
    %197 = vmatpush1.bf16.msra.mxu0 %v187
    %198 = vmatprep.subr.bf16.mxu0 0
    %199 = vmatpush1.bf16.msra.mxu0 %v188
    %200 = vmatprep.subr.bf16.mxu0 0
    %201 = vmatpush1.bf16.msra.mxu0 %v189
    %202 = vmatprep.subr.bf16.mxu0 0
    %203 = vmatpush1.bf16.msra.mxu0 0
    %204 = vmatprep.subr.bf16.mxu0 0
    %205 = vmatpush1.bf16.msra.mxu0 0
    %206 = vmatprep.subr.bf16.mxu0 0
    %207 = vmatpush1.bf16.msra.mxu0 0
    %208 = vmatprep.subr.bf16.mxu0 0
    %209 = vmatpush1.bf16.msra.mxu0 0
    %210 = vmatprep.subr.bf16.mxu0 0
    %211 = vmatpush1.bf16.msra.mxu0 0
    %212 = vmatprep.subr.bf16.mxu0 0
    %213 = vmatpush1.bf16.msra.mxu0 0
    %214 = vmatprep.subr.bf16.mxu0 0
    %215 = vmatpush1.bf16.msra.mxu0 0
    %216 = vmatprep.subr.bf16.mxu0 0
    %217 = vmatpush1.bf16.msra.mxu0 0
    %218 = vmatprep.subr.bf16.mxu0 0
    %219 = vmatpush1.bf16.msra.mxu0 0
    %220 = vmatprep.subr.bf16.mxu0 0
    %221 = vmatpush1.bf16.msra.mxu0 0
    %222 = vmatprep.subr.bf16.mxu0 0
    %223 = vmatpush1.bf16.msra.mxu0 0
    %224 = vmatprep.subr.bf16.mxu0 0
    %225 = vmatpush1.bf16.msra.mxu0 0
    %226 = vmatprep.mubr.bf16.mxu0 0
    %227 = vmatmul.mubr.bf16.gmra.mrb[0].mxu0 %v95
    %v228 = vpop.f32.mrb[0].mxu0
    %v229 = vadd.f32 %v168, %v228
    %v230 = vpop.f32.mrb[0].mxu0
    %v231 = vpop.f32.mrb[0].mxu0
    %v232 = vpop.f32.mrb[0].mxu0
    %233 = vdwg.mxu0
    %v234 = vmax.f32 %v229, 0.0
    %v235 = vpack.c.bf16 %v234, %v234
    %v236 = vld [vmem:[#allocation2 + $0x80] sm:$0xff]
    %v237 = vld [vmem:[#allocation2 + $0x88] sm:$0xff]
    %v238 = vld [vmem:[#allocation2 + $0x90] sm:$0xff]
    %v239 = vld [vmem:[#allocation2 + $0x98] sm:$0xff]
    %v240 = vld [vmem:[#allocation2 + $0xa0] sm:$0xff]
    %v241 = vld [vmem:[#allocation2 + $0xa8] sm:$0xff]
    %v242 = vld [vmem:[#allocation2 + $0xb0] sm:$0xff]
    %v243 = vld [vmem:[#allocation2 + $0xb8] sm:$0xff]
    %v244 = vld [vmem:[#allocation2 + $0xc0] sm:$0xff]
    %v245 = vld [vmem:[#allocation2 + $0xc8] sm:$0xff]
    %v246 = vld [vmem:[#allocation2 + $0xd0] sm:$0xff]
    %v247 = vld [vmem:[#allocation2 + $0xd8] sm:$0xff]
    %v248 = vld [vmem:[#allocation2 + $0xe0] sm:$0xff]
    %v249 = vld [vmem:[#allocation2 + $0xe8] sm:$0xff]
    %v250 = vld [vmem:[#allocation2 + $0xf0] sm:$0xff]
    %v251 = vld [vmem:[#allocation2 + $0xf8] sm:$0xff]
    %v268 = vunpack.c.l.b16 %v236
    %v269 = vunpack.c.h.b16 %v236
    %v270 = vunpack.c.l.b16 %v237
    %v271 = vunpack.c.h.b16 %v237
    %v272 = vunpack.c.l.b16 %v238
    %v273 = vunpack.c.h.b16 %v238
    %v274 = vunpack.c.l.b16 %v239
    %v275 = vunpack.c.h.b16 %v239
    %v276 = vunpack.c.l.b16 %v240
    %v277 = vunpack.c.h.b16 %v240
    %v278 = vunpack.c.l.b16 %v241
    %v279 = vunpack.c.h.b16 %v241
    %v280 = vunpack.c.l.b16 %v242
    %v281 = vunpack.c.h.b16 %v242
    %v282 = vunpack.c.l.b16 %v243
    %v283 = vunpack.c.h.b16 %v243
    %v284 = vunpack.c.l.b16 %v244
    %v285 = vunpack.c.h.b16 %v244
    %v286 = vunpack.c.l.b16 %v245
    %v287 = vunpack.c.h.b16 %v245
    %v288 = vunpack.c.l.b16 %v246
    %v289 = vunpack.c.h.b16 %v246
    %v290 = vunpack.c.l.b16 %v247
    %v291 = vunpack.c.h.b16 %v247
    %v292 = vunpack.c.l.b16 %v248
    %v293 = vunpack.c.h.b16 %v248
    %v294 = vunpack.c.l.b16 %v249
    %v295 = vunpack.c.h.b16 %v249
    %v296 = vunpack.c.l.b16 %v250
    %v297 = vunpack.c.h.b16 %v250
    %v298 = vunpack.c.l.b16 %v251
    %v299 = vunpack.c.h.b16 %v251
    %v300 = vpack.c.b16 %v270, %v268
    %v301 = vpack.c.b16 %v271, %v269
    %v302 = vpack.c.b16 %v274, %v272
    %v303 = vpack.c.b16 %v275, %v273
    %v304 = vpack.c.b16 %v278, %v276
    %v305 = vpack.c.b16 %v279, %v277
    %v306 = vpack.c.b16 %v282, %v280
    %v307 = vpack.c.b16 %v283, %v281
    %v308 = vpack.c.b16 %v286, %v284
    %v309 = vpack.c.b16 %v287, %v285
    %v310 = vpack.c.b16 %v290, %v288
    %v311 = vpack.c.b16 %v291, %v289
    %v312 = vpack.c.b16 %v294, %v292
    %v313 = vpack.c.b16 %v295, %v293
    %v314 = vpack.c.b16 %v298, %v296
    %v315 = vpack.c.b16 %v299, %v297
    %332 = vmatprep.subr.bf16.mxu0 %v301
    %333 = vmatpush1.bf16.msra.mxu0 %v300
    %334 = vmatprep.subr.bf16.mxu0 %v303
    %335 = vmatpush1.bf16.msra.mxu0 %v302
    %336 = vmatprep.subr.bf16.mxu0 %v305
    %337 = vmatpush1.bf16.msra.mxu0 %v304
    %338 = vmatprep.subr.bf16.mxu0 %v307
    %339 = vmatpush1.bf16.msra.mxu0 %v306
    %340 = vmatprep.subr.bf16.mxu0 %v309
    %341 = vmatpush1.bf16.msra.mxu0 %v308
    %342 = vmatprep.subr.bf16.mxu0 %v311
    %343 = vmatpush1.bf16.msra.mxu0 %v310
    %344 = vmatprep.subr.bf16.mxu0 %v313
    %345 = vmatpush1.bf16.msra.mxu0 %v312
    %346 = vmatprep.subr.bf16.mxu0 %v315
    %347 = vmatpush1.bf16.msra.mxu0 %v314
    %348 = vmatprep.subr.bf16.mxu0 0
    %349 = vmatpush1.bf16.msra.mxu0 0
    %350 = vmatprep.subr.bf16.mxu0 0
    %351 = vmatpush1.bf16.msra.mxu0 0
    %352 = vmatprep.subr.bf16.mxu0 0
    %353 = vmatpush1.bf16.msra.mxu0 0
    %354 = vmatprep.subr.bf16.mxu0 0
    %355 = vmatpush1.bf16.msra.mxu0 0
    %356 = vmatprep.subr.bf16.mxu0 0
    %357 = vmatpush1.bf16.msra.mxu0 0
    %358 = vmatprep.subr.bf16.mxu0 0
    %359 = vmatpush1.bf16.msra.mxu0 0
    %360 = vmatprep.subr.bf16.mxu0 0
    %361 = vmatpush1.bf16.msra.mxu0 0
    %362 = vmatprep.subr.bf16.mxu0 0
    %363 = vmatpush1.bf16.msra.mxu0 0
    %364 = vmatprep.mubr.bf16.mxu0 0
    %365 = vmatmul.mubr.bf16.gmra.mrb[0].mxu0 %v235
    %v366 = vpop.f32.mrb[0].mxu0
    %v367 = vadd.f32 0.0, %v366
    %v368 = vpop.f32.mrb[0].mxu0
    %v369 = vadd.f32 0.0, %v368
    %v370 = vpop.f32.mrb[0].mxu0
    %v371 = vpop.f32.mrb[0].mxu0
    %372 = vdwg.mxu0
    %v389 = vunpack.c.l.b16 %v139
    %v390 = vunpack.c.h.b16 %v139
    %v391 = vunpack.c.l.b16 %v140
    %v392 = vunpack.c.h.b16 %v140
    %v393 = vunpack.c.l.b16 %v141
    %v394 = vunpack.c.h.b16 %v141
    %v395 = vunpack.c.l.b16 %v142
    %v396 = vunpack.c.h.b16 %v142
    %v397 = vunpack.c.l.b16 %v143
    %v398 = vunpack.c.h.b16 %v143
    %v399 = vunpack.c.l.b16 %v144
    %v400 = vunpack.c.h.b16 %v144
    %v401 = vunpack.c.l.b16 %v145
    %v402 = vunpack.c.h.b16 %v145
    %v403 = vunpack.c.l.b16 %v146
    %v404 = vunpack.c.h.b16 %v146
    %v405 = vunpack.c.l.b16 %v147
    %v406 = vunpack.c.h.b16 %v147
    %v407 = vunpack.c.l.b16 %v148
    %v408 = vunpack.c.h.b16 %v148
    %v409 = vunpack.c.l.b16 %v149
    %v410 = vunpack.c.h.b16 %v149
    %v411 = vunpack.c.l.b16 %v150
    %v412 = vunpack.c.h.b16 %v150
    %v413 = vunpack.c.l.b16 %v151
    %v414 = vunpack.c.h.b16 %v151
    %v415 = vunpack.c.l.b16 %v152
    %v416 = vunpack.c.h.b16 %v152
    %v417 = vunpack.c.l.b16 %v153
    %v418 = vunpack.c.h.b16 %v153
    %v419 = vunpack.c.l.b16 %v154
    %v420 = vunpack.c.h.b16 %v154
    %v421 = vpack.c.b16 %v391, %v389
    %v422 = vpack.c.b16 %v392, %v390
    %v423 = vpack.c.b16 %v395, %v393
    %v424 = vpack.c.b16 %v396, %v394
    %v425 = vpack.c.b16 %v399, %v397
    %v426 = vpack.c.b16 %v400, %v398
    %v427 = vpack.c.b16 %v403, %v401
    %v428 = vpack.c.b16 %v404, %v402
    %v429 = vpack.c.b16 %v407, %v405
    %v430 = vpack.c.b16 %v408, %v406
    %v431 = vpack.c.b16 %v411, %v409
    %v432 = vpack.c.b16 %v412, %v410
    %v433 = vpack.c.b16 %v415, %v413
    %v434 = vpack.c.b16 %v416, %v414
    %v435 = vpack.c.b16 %v419, %v417
    %v436 = vpack.c.b16 %v420, %v418
    %453 = vmatprep.subr.bf16.mxu0 %v422
    %454 = vmatpush1.bf16.msra.mxu0 %v421
    %455 = vmatprep.subr.bf16.mxu0 %v424
    %456 = vmatpush1.bf16.msra.mxu0 %v423
    %457 = vmatprep.subr.bf16.mxu0 %v426
    %458 = vmatpush1.bf16.msra.mxu0 %v425
    %459 = vmatprep.subr.bf16.mxu0 %v428
    %460 = vmatpush1.bf16.msra.mxu0 %v427
    %461 = vmatprep.subr.bf16.mxu0 %v430
    %462 = vmatpush1.bf16.msra.mxu0 %v429
    %463 = vmatprep.subr.bf16.mxu0 %v432
    %464 = vmatpush1.bf16.msra.mxu0 %v431
    %465 = vmatprep.subr.bf16.mxu0 %v434
    %466 = vmatpush1.bf16.msra.mxu0 %v433
    %467 = vmatprep.subr.bf16.mxu0 %v436
    %468 = vmatpush1.bf16.msra.mxu0 %v435
    %469 = vmatprep.subr.bf16.mxu0 0
    %470 = vmatpush1.bf16.msra.mxu0 0
    %471 = vmatprep.subr.bf16.mxu0 0
    %472 = vmatpush1.bf16.msra.mxu0 0
    %473 = vmatprep.subr.bf16.mxu0 0
    %474 = vmatpush1.bf16.msra.mxu0 0
    %475 = vmatprep.subr.bf16.mxu0 0
    %476 = vmatpush1.bf16.msra.mxu0 0
    %477 = vmatprep.subr.bf16.mxu0 0
    %478 = vmatpush1.bf16.msra.mxu0 0
    %479 = vmatprep.subr.bf16.mxu0 0
    %480 = vmatpush1.bf16.msra.mxu0 0
    %481 = vmatprep.subr.bf16.mxu0 0
    %482 = vmatpush1.bf16.msra.mxu0 0
    %483 = vmatprep.subr.bf16.mxu0 0
    %484 = vmatpush1.bf16.msra.mxu0 0
    %485 = vmatprep.mubr.bf16.mxu0 0
    %486 = vmatmul.mubr.bf16.gmra.mrb[0].mxu0 %v138
    %v487 = vpop.f32.mrb[0].mxu0
    %v488 = vadd.f32 %v367, %v487
    %v489 = vpop.f32.mrb[0].mxu0
    %v490 = vadd.f32 %v369, %v489
    %v491 = vpop.f32.mrb[0].mxu0
    %v492 = vpop.f32.mrb[0].mxu0
    %493 = vdwg.mxu0
    %v494 = vld [vmem:[%s2 + $0x8] sm:$0xf]
    %v495 = vld [vmem:[%s2 + $0x18] sm:$0xf]
    %v496 = vld [vmem:[%s2 + $0x28] sm:$0xf]
    %v497 = vld [vmem:[%s2 + $0x38] sm:$0xf]
    %v498 = vld [vmem:[%s2 + $0x48] sm:$0xf]
    %v499 = vld [vmem:[%s2 + $0x58] sm:$0xf]
    %v500 = vld [vmem:[%s2 + $0x68] sm:$0xf]
    %v501 = vld [vmem:[%s2 + $0x78] sm:$0xf]
    %v502 = vld [vmem:[%s3 + $0x2] sm:$0x1]
    %v504 = vlaneseq
    %v505 = vshrl.u32 %v504, 7
    %v506 = vsub.s32 0, %v505
    %v507 = vrot.slane %v502, %v506
    %v517 = vunpack.c.l.b16 %v494
    %v518 = vunpack.c.l.b16 %v495
    %v519 = vunpack.c.l.b16 %v496
    %v520 = vunpack.c.l.b16 %v497
    %v521 = vunpack.c.l.b16 %v498
    %v522 = vunpack.c.l.b16 %v499
    %v523 = vunpack.c.l.b16 %v500
    %v524 = vunpack.c.l.b16 %v501
    %v525 = vpack.c.b16 %v518, %v517
    %v526 = vpack.c.b16 %v520, %v519
    %v527 = vpack.c.b16 %v522, %v521
    %v528 = vpack.c.b16 %v524, %v523
    %533 = vmatprep.subr.bf16.mxu0 0
    %534 = vmatpush1.bf16.msra.mxu0 %v525
    %535 = vmatprep.subr.bf16.mxu0 0
    %536 = vmatpush1.bf16.msra.mxu0 %v526
    %537 = vmatprep.subr.bf16.mxu0 0
    %538 = vmatpush1.bf16.msra.mxu0 %v527
    %539 = vmatprep.subr.bf16.mxu0 0
    %540 = vmatpush1.bf16.msra.mxu0 %v528
    %541 = vmatprep.subr.bf16.mxu0 0
    %542 = vmatpush1.bf16.msra.mxu0 0
    %543 = vmatprep.subr.bf16.mxu0 0
    %544 = vmatpush1.bf16.msra.mxu0 0
    %545 = vmatprep.subr.bf16.mxu0 0
    %546 = vmatpush1.bf16.msra.mxu0 0
    %547 = vmatprep.subr.bf16.mxu0 0
    %548 = vmatpush1.bf16.msra.mxu0 0
    %549 = vmatprep.subr.bf16.mxu0 0
    %550 = vmatpush1.bf16.msra.mxu0 0
    %551 = vmatprep.subr.bf16.mxu0 0
    %552 = vmatpush1.bf16.msra.mxu0 0
    %553 = vmatprep.subr.bf16.mxu0 0
    %554 = vmatpush1.bf16.msra.mxu0 0
    %555 = vmatprep.subr.bf16.mxu0 0
    %556 = vmatpush1.bf16.msra.mxu0 0
    %557 = vmatprep.subr.bf16.mxu0 0
    %558 = vmatpush1.bf16.msra.mxu0 0
    %559 = vmatprep.subr.bf16.mxu0 0
    %560 = vmatpush1.bf16.msra.mxu0 0
    %561 = vmatprep.subr.bf16.mxu0 0
    %562 = vmatpush1.bf16.msra.mxu0 0
    %563 = vmatprep.subr.bf16.mxu0 0
    %564 = vmatpush1.bf16.msra.mxu0 0
    %565 = vmatprep.mubr.bf16.mxu0 0
    %566 = vmatmul.mubr.bf16.gmra.mrb[0].mxu0 %v95
    %v567 = vpop.f32.mrb[0].mxu0
    %v568 = vadd.f32 %v507, %v567
    %v569 = vpop.f32.mrb[0].mxu0
    %v570 = vpop.f32.mrb[0].mxu0
    %v571 = vpop.f32.mrb[0].mxu0
    %572 = vdwg.mxu0
    %v573 = vmax.f32 %v568, 0.0
    %v574 = vpack.c.bf16 %v573, %v573
    %v575 = vld [vmem:[#allocation2 + $0x100] sm:$0xff]
    %v576 = vld [vmem:[#allocation2 + $0x108] sm:$0xff]
    %v577 = vld [vmem:[#allocation2 + $0x110] sm:$0xff]
    %v578 = vld [vmem:[#allocation2 + $0x118] sm:$0xff]
    %v579 = vld [vmem:[#allocation2 + $0x120] sm:$0xff]
    %v580 = vld [vmem:[#allocation2 + $0x128] sm:$0xff]
    %v581 = vld [vmem:[#allocation2 + $0x130] sm:$0xff]
    %v582 = vld [vmem:[#allocation2 + $0x138] sm:$0xff]
    %v583 = vld [vmem:[#allocation2 + $0x140] sm:$0xff]
    %v584 = vld [vmem:[#allocation2 + $0x148] sm:$0xff]
    %v585 = vld [vmem:[#allocation2 + $0x150] sm:$0xff]
    %v586 = vld [vmem:[#allocation2 + $0x158] sm:$0xff]
    %v587 = vld [vmem:[#allocation2 + $0x160] sm:$0xff]
    %v588 = vld [vmem:[#allocation2 + $0x168] sm:$0xff]
    %v589 = vld [vmem:[#allocation2 + $0x170] sm:$0xff]
    %v590 = vld [vmem:[#allocation2 + $0x178] sm:$0xff]
    %v607 = vunpack.c.l.b16 %v575
    %v608 = vunpack.c.h.b16 %v575
    %v609 = vunpack.c.l.b16 %v576
    %v610 = vunpack.c.h.b16 %v576
    %v611 = vunpack.c.l.b16 %v577
    %v612 = vunpack.c.h.b16 %v577
    %v613 = vunpack.c.l.b16 %v578
    %v614 = vunpack.c.h.b16 %v578
    %v615 = vunpack.c.l.b16 %v579
    %v616 = vunpack.c.h.b16 %v579
    %v617 = vunpack.c.l.b16 %v580
    %v618 = vunpack.c.h.b16 %v580
    %v619 = vunpack.c.l.b16 %v581
    %v620 = vunpack.c.h.b16 %v581
    %v621 = vunpack.c.l.b16 %v582
    %v622 = vunpack.c.h.b16 %v582
    %v623 = vunpack.c.l.b16 %v583
    %v624 = vunpack.c.h.b16 %v583
    %v625 = vunpack.c.l.b16 %v584
    %v626 = vunpack.c.h.b16 %v584
    %v627 = vunpack.c.l.b16 %v585
    %v628 = vunpack.c.h.b16 %v585
    %v629 = vunpack.c.l.b16 %v586
    %v630 = vunpack.c.h.b16 %v586
    %v631 = vunpack.c.l.b16 %v587
    %v632 = vunpack.c.h.b16 %v587
    %v633 = vunpack.c.l.b16 %v588
    %v634 = vunpack.c.h.b16 %v588
    %v635 = vunpack.c.l.b16 %v589
    %v636 = vunpack.c.h.b16 %v589
    %v637 = vunpack.c.l.b16 %v590
    %v638 = vunpack.c.h.b16 %v590
    %v639 = vpack.c.b16 %v609, %v607
    %v640 = vpack.c.b16 %v610, %v608
    %v641 = vpack.c.b16 %v613, %v611
    %v642 = vpack.c.b16 %v614, %v612
    %v643 = vpack.c.b16 %v617, %v615
    %v644 = vpack.c.b16 %v618, %v616
    %v645 = vpack.c.b16 %v621, %v619
    %v646 = vpack.c.b16 %v622, %v620
    %v647 = vpack.c.b16 %v625, %v623
    %v648 = vpack.c.b16 %v626, %v624
    %v649 = vpack.c.b16 %v629, %v627
    %v650 = vpack.c.b16 %v630, %v628
    %v651 = vpack.c.b16 %v633, %v631
    %v652 = vpack.c.b16 %v634, %v632
    %v653 = vpack.c.b16 %v637, %v635
    %v654 = vpack.c.b16 %v638, %v636
    %671 = vmatprep.subr.bf16.mxu0 %v640
    %672 = vmatpush1.bf16.msra.mxu0 %v639
    %673 = vmatprep.subr.bf16.mxu0 %v642
    %674 = vmatpush1.bf16.msra.mxu0 %v641
    %675 = vmatprep.subr.bf16.mxu0 %v644
    %676 = vmatpush1.bf16.msra.mxu0 %v643
    %677 = vmatprep.subr.bf16.mxu0 %v646
    %678 = vmatpush1.bf16.msra.mxu0 %v645
    %679 = vmatprep.subr.bf16.mxu0 %v648
    %680 = vmatpush1.bf16.msra.mxu0 %v647
    %681 = vmatprep.subr.bf16.mxu0 %v650
    %682 = vmatpush1.bf16.msra.mxu0 %v649
    %683 = vmatprep.subr.bf16.mxu0 %v652
    %684 = vmatpush1.bf16.msra.mxu0 %v651
    %685 = vmatprep.subr.bf16.mxu0 %v654
    %686 = vmatpush1.bf16.msra.mxu0 %v653
    %687 = vmatprep.subr.bf16.mxu0 0
    %688 = vmatpush1.bf16.msra.mxu0 0
    %689 = vmatprep.subr.bf16.mxu0 0
    %690 = vmatpush1.bf16.msra.mxu0 0
    %691 = vmatprep.subr.bf16.mxu0 0
    %692 = vmatpush1.bf16.msra.mxu0 0
    %693 = vmatprep.subr.bf16.mxu0 0
    %694 = vmatpush1.bf16.msra.mxu0 0
    %695 = vmatprep.subr.bf16.mxu0 0
    %696 = vmatpush1.bf16.msra.mxu0 0
    %697 = vmatprep.subr.bf16.mxu0 0
    %698 = vmatpush1.bf16.msra.mxu0 0
    %699 = vmatprep.subr.bf16.mxu0 0
    %700 = vmatpush1.bf16.msra.mxu0 0
    %701 = vmatprep.subr.bf16.mxu0 0
    %702 = vmatpush1.bf16.msra.mxu0 0
    %703 = vmatprep.mubr.bf16.mxu0 0
    %704 = vmatmul.mubr.bf16.gmra.mrb[0].mxu0 %v574
    %v705 = vpop.f32.mrb[0].mxu0
    %v706 = vadd.f32 0.0, %v705
    %v707 = vpop.f32.mrb[0].mxu0
    %v708 = vadd.f32 0.0, %v707
    %v709 = vpop.f32.mrb[0].mxu0
    %v710 = vpop.f32.mrb[0].mxu0
    %711 = vdwg.mxu0
    %v712 = vadd.f32 %v488, %v706
    %v713 = vadd.f32 %v490, %v708
    %v714 = vld [vmem:[%s2 + $0xc] sm:$0xf]
    %v715 = vld [vmem:[%s2 + $0x1c] sm:$0xf]
    %v716 = vld [vmem:[%s2 + $0x2c] sm:$0xf]
    %v717 = vld [vmem:[%s2 + $0x3c] sm:$0xf]
    %v718 = vld [vmem:[%s2 + $0x4c] sm:$0xf]
    %v719 = vld [vmem:[%s2 + $0x5c] sm:$0xf]
    %v720 = vld [vmem:[%s2 + $0x6c] sm:$0xf]
    %v721 = vld [vmem:[%s2 + $0x7c] sm:$0xf]
    %v722 = vld [vmem:[%s3 + $0x3] sm:$0x1]
    %v724 = vlaneseq
    %v725 = vshrl.u32 %v724, 7
    %v726 = vsub.s32 0, %v725
    %v727 = vrot.slane %v722, %v726
    %v737 = vunpack.c.l.b16 %v714
    %v738 = vunpack.c.l.b16 %v715
    %v739 = vunpack.c.l.b16 %v716
    %v740 = vunpack.c.l.b16 %v717
    %v741 = vunpack.c.l.b16 %v718
    %v742 = vunpack.c.l.b16 %v719
    %v743 = vunpack.c.l.b16 %v720
    %v744 = vunpack.c.l.b16 %v721
    %v745 = vpack.c.b16 %v738, %v737
    %v746 = vpack.c.b16 %v740, %v739
    %v747 = vpack.c.b16 %v742, %v741
    %v748 = vpack.c.b16 %v744, %v743
    %753 = vmatprep.subr.bf16.mxu0 0
    %754 = vmatpush1.bf16.msra.mxu0 %v745
    %755 = vmatprep.subr.bf16.mxu0 0
    %756 = vmatpush1.bf16.msra.mxu0 %v746
    %757 = vmatprep.subr.bf16.mxu0 0
    %758 = vmatpush1.bf16.msra.mxu0 %v747
    %759 = vmatprep.subr.bf16.mxu0 0
    %760 = vmatpush1.bf16.msra.mxu0 %v748
    %761 = vmatprep.subr.bf16.mxu0 0
    %762 = vmatpush1.bf16.msra.mxu0 0
    %763 = vmatprep.subr.bf16.mxu0 0
    %764 = vmatpush1.bf16.msra.mxu0 0
    %765 = vmatprep.subr.bf16.mxu0 0
    %766 = vmatpush1.bf16.msra.mxu0 0
    %767 = vmatprep.subr.bf16.mxu0 0
    %768 = vmatpush1.bf16.msra.mxu0 0
    %769 = vmatprep.subr.bf16.mxu0 0
    %770 = vmatpush1.bf16.msra.mxu0 0
    %771 = vmatprep.subr.bf16.mxu0 0
    %772 = vmatpush1.bf16.msra.mxu0 0
    %773 = vmatprep.subr.bf16.mxu0 0
    %774 = vmatpush1.bf16.msra.mxu0 0
    %775 = vmatprep.subr.bf16.mxu0 0
    %776 = vmatpush1.bf16.msra.mxu0 0
    %777 = vmatprep.subr.bf16.mxu0 0
    %778 = vmatpush1.bf16.msra.mxu0 0
    %779 = vmatprep.subr.bf16.mxu0 0
    %780 = vmatpush1.bf16.msra.mxu0 0
    %781 = vmatprep.subr.bf16.mxu0 0
    %782 = vmatpush1.bf16.msra.mxu0 0
    %783 = vmatprep.subr.bf16.mxu0 0
    %784 = vmatpush1.bf16.msra.mxu0 0
    %785 = vmatprep.mubr.bf16.mxu0 0
    %786 = vmatmul.mubr.bf16.gmra.mrb[0].mxu0 %v95
    %v787 = vpop.f32.mrb[0].mxu0
    %v788 = vadd.f32 %v727, %v787
    %v789 = vpop.f32.mrb[0].mxu0
    %v790 = vpop.f32.mrb[0].mxu0
    %v791 = vpop.f32.mrb[0].mxu0
    %792 = vdwg.mxu0
    %v793 = vmax.f32 %v788, 0.0
    %v794 = vpack.c.bf16 %v793, %v793
    %v795 = vld [vmem:[#allocation2 + $0x180] sm:$0xff]
    %v796 = vld [vmem:[#allocation2 + $0x188] sm:$0xff]
    %v797 = vld [vmem:[#allocation2 + $0x190] sm:$0xff]
    %v798 = vld [vmem:[#allocation2 + $0x198] sm:$0xff]
    %v799 = vld [vmem:[#allocation2 + $0x1a0] sm:$0xff]
    %v800 = vld [vmem:[#allocation2 + $0x1a8] sm:$0xff]
    %v801 = vld [vmem:[#allocation2 + $0x1b0] sm:$0xff]
    %v802 = vld [vmem:[#allocation2 + $0x1b8] sm:$0xff]
    %v803 = vld [vmem:[#allocation2 + $0x1c0] sm:$0xff]
    %v804 = vld [vmem:[#allocation2 + $0x1c8] sm:$0xff]
    %v805 = vld [vmem:[#allocation2 + $0x1d0] sm:$0xff]
    %v806 = vld [vmem:[#allocation2 + $0x1d8] sm:$0xff]
    %v807 = vld [vmem:[#allocation2 + $0x1e0] sm:$0xff]
    %v808 = vld [vmem:[#allocation2 + $0x1e8] sm:$0xff]
    %v809 = vld [vmem:[#allocation2 + $0x1f0] sm:$0xff]
    %v810 = vld [vmem:[#allocation2 + $0x1f8] sm:$0xff]
    %v827 = vunpack.c.l.b16 %v795
    %v828 = vunpack.c.h.b16 %v795
    %v829 = vunpack.c.l.b16 %v796
    %v830 = vunpack.c.h.b16 %v796
    %v831 = vunpack.c.l.b16 %v797
    %v832 = vunpack.c.h.b16 %v797
    %v833 = vunpack.c.l.b16 %v798
    %v834 = vunpack.c.h.b16 %v798
    %v835 = vunpack.c.l.b16 %v799
    %v836 = vunpack.c.h.b16 %v799
    %v837 = vunpack.c.l.b16 %v800
    %v838 = vunpack.c.h.b16 %v800
    %v839 = vunpack.c.l.b16 %v801
    %v840 = vunpack.c.h.b16 %v801
    %v841 = vunpack.c.l.b16 %v802
    %v842 = vunpack.c.h.b16 %v802
    %v843 = vunpack.c.l.b16 %v803
    %v844 = vunpack.c.h.b16 %v803
    %v845 = vunpack.c.l.b16 %v804
    %v846 = vunpack.c.h.b16 %v804
    %v847 = vunpack.c.l.b16 %v805
    %v848 = vunpack.c.h.b16 %v805
    %v849 = vunpack.c.l.b16 %v806
    %v850 = vunpack.c.h.b16 %v806
    %v851 = vunpack.c.l.b16 %v807
    %v852 = vunpack.c.h.b16 %v807
    %v853 = vunpack.c.l.b16 %v808
    %v854 = vunpack.c.h.b16 %v808
    %v855 = vunpack.c.l.b16 %v809
    %v856 = vunpack.c.h.b16 %v809
    %v857 = vunpack.c.l.b16 %v810
    %v858 = vunpack.c.h.b16 %v810
    %v859 = vpack.c.b16 %v829, %v827
    %v860 = vpack.c.b16 %v830, %v828
    %v861 = vpack.c.b16 %v833, %v831
    %v862 = vpack.c.b16 %v834, %v832
    %v863 = vpack.c.b16 %v837, %v835
    %v864 = vpack.c.b16 %v838, %v836
    %v865 = vpack.c.b16 %v841, %v839
    %v866 = vpack.c.b16 %v842, %v840
    %v867 = vpack.c.b16 %v845, %v843
    %v868 = vpack.c.b16 %v846, %v844
    %v869 = vpack.c.b16 %v849, %v847
    %v870 = vpack.c.b16 %v850, %v848
    %v871 = vpack.c.b16 %v853, %v851
    %v872 = vpack.c.b16 %v854, %v852
    %v873 = vpack.c.b16 %v857, %v855
    %v874 = vpack.c.b16 %v858, %v856
    %891 = vmatprep.subr.bf16.mxu0 %v860
    %892 = vmatpush1.bf16.msra.mxu0 %v859
    %893 = vmatprep.subr.bf16.mxu0 %v862
    %894 = vmatpush1.bf16.msra.mxu0 %v861
    %895 = vmatprep.subr.bf16.mxu0 %v864
    %896 = vmatpush1.bf16.msra.mxu0 %v863
    %897 = vmatprep.subr.bf16.mxu0 %v866
    %898 = vmatpush1.bf16.msra.mxu0 %v865
    %899 = vmatprep.subr.bf16.mxu0 %v868
    %900 = vmatpush1.bf16.msra.mxu0 %v867
    %901 = vmatprep.subr.bf16.mxu0 %v870
    %902 = vmatpush1.bf16.msra.mxu0 %v869
    %903 = vmatprep.subr.bf16.mxu0 %v872
    %904 = vmatpush1.bf16.msra.mxu0 %v871
    %905 = vmatprep.subr.bf16.mxu0 %v874
    %906 = vmatpush1.bf16.msra.mxu0 %v873
    %907 = vmatprep.subr.bf16.mxu0 0
    %908 = vmatpush1.bf16.msra.mxu0 0
    %909 = vmatprep.subr.bf16.mxu0 0
    %910 = vmatpush1.bf16.msra.mxu0 0
    %911 = vmatprep.subr.bf16.mxu0 0
    %912 = vmatpush1.bf16.msra.mxu0 0
    %913 = vmatprep.subr.bf16.mxu0 0
    %914 = vmatpush1.bf16.msra.mxu0 0
    %915 = vmatprep.subr.bf16.mxu0 0
    %916 = vmatpush1.bf16.msra.mxu0 0
    %917 = vmatprep.subr.bf16.mxu0 0
    %918 = vmatpush1.bf16.msra.mxu0 0
    %919 = vmatprep.subr.bf16.mxu0 0
    %920 = vmatpush1.bf16.msra.mxu0 0
    %921 = vmatprep.subr.bf16.mxu0 0
    %922 = vmatpush1.bf16.msra.mxu0 0
    %923 = vmatprep.mubr.bf16.mxu0 0
    %924 = vmatmul.mubr.bf16.gmra.mrb[0].mxu0 %v794
    %v925 = vpop.f32.mrb[0].mxu0
    %v926 = vadd.f32 0.0, %v925
    %v927 = vpop.f32.mrb[0].mxu0
    %v928 = vadd.f32 0.0, %v927
    %v929 = vpop.f32.mrb[0].mxu0
    %v930 = vpop.f32.mrb[0].mxu0
    %931 = vdwg.mxu0
    %v932 = vadd.f32 %v712, %v926
    %v933 = vadd.f32 %v713, %v928
    %v934 = vld [vmem:[%s5] sm:$0x3]
    %v936 = vlaneseq
    %v937 = vshrl.u32 %v936, 7
    %v938 = vsub.s32 0, %v937
    %v939 = vrot.slane %v934, %v938
    %v940 = vlaneseq
    %v941 = vshrl.u32 %v940, 7
    %v942 = vsub.s32 1, %v941
    %v943 = vrot.slane %v934, %v942
    %v946 = vadd.f32 %v932, %v939
    %v947 = vadd.f32 %v933, %v943
    %v948 = vmax.f32 %v946, 0.0
    %v949 = vmax.f32 %v947, 0.0
    %v950 = vpack.c.bf16 %v948, %v948
    %v951 = vpack.c.bf16 %v949, %v949
    %v952 = vld [vmem:[%s6] sm:$0xf]
    %v953 = vld [vmem:[%s6 + $0x4] sm:$0xf]
    %v954 = vld [vmem:[%s6 + $0x8] sm:$0xf]
    %v955 = vld [vmem:[%s6 + $0xc] sm:$0xf]
    %v956 = vld [vmem:[%s6 + $0x10] sm:$0xf]
    %v957 = vld [vmem:[%s6 + $0x14] sm:$0xf]
    %v958 = vld [vmem:[%s6 + $0x18] sm:$0xf]
    %v959 = vld [vmem:[%s6 + $0x1c] sm:$0xf]
    %v960 = vld [vmem:[%s6 + $0x20] sm:$0xf]
    %v961 = vld [vmem:[%s6 + $0x24] sm:$0xf]
    %v962 = vld [vmem:[%s6 + $0x28] sm:$0xf]
    %v963 = vld [vmem:[%s6 + $0x2c] sm:$0xf]
    %v964 = vld [vmem:[%s6 + $0x30] sm:$0xf]
    %v965 = vld [vmem:[%s6 + $0x34] sm:$0xf]
    %v966 = vld [vmem:[%s6 + $0x38] sm:$0xf]
    %v967 = vld [vmem:[%s6 + $0x3c] sm:$0xf]
    %v968 = vld [vmem:[%s6 + $0x40] sm:$0xf]
    %v969 = vld [vmem:[%s6 + $0x44] sm:$0xf]
    %v970 = vld [vmem:[%s6 + $0x48] sm:$0xf]
    %v971 = vld [vmem:[%s6 + $0x4c] sm:$0xf]
    %v972 = vld [vmem:[%s6 + $0x50] sm:$0xf]
    %v973 = vld [vmem:[%s6 + $0x54] sm:$0xf]
    %v974 = vld [vmem:[%s6 + $0x58] sm:$0xf]
    %v975 = vld [vmem:[%s6 + $0x5c] sm:$0xf]
    %v976 = vld [vmem:[%s6 + $0x60] sm:$0xf]
    %v977 = vld [vmem:[%s6 + $0x64] sm:$0xf]
    %v978 = vld [vmem:[%s6 + $0x68] sm:$0xf]
    %v979 = vld [vmem:[%s6 + $0x6c] sm:$0xf]
    %v980 = vld [vmem:[%s6 + $0x70] sm:$0xf]
    %v981 = vld [vmem:[%s6 + $0x74] sm:$0xf]
    %v982 = vld [vmem:[%s6 + $0x78] sm:$0xf]
    %v983 = vld [vmem:[%s6 + $0x7c] sm:$0xf]
    %v984 = vld [vmem:[%s7] sm:$0x1]
    %v986 = vlaneseq
    %v987 = vshrl.u32 %v986, 7
    %v988 = vsub.s32 0, %v987
    %v989 = vrot.slane %v984, %v988
    %v1023 = vunpack.c.l.b16 %v952
    %v1024 = vunpack.c.l.b16 %v953
    %v1025 = vunpack.c.l.b16 %v954
    %v1026 = vunpack.c.l.b16 %v955
    %v1027 = vunpack.c.l.b16 %v956
    %v1028 = vunpack.c.l.b16 %v957
    %v1029 = vunpack.c.l.b16 %v958
    %v1030 = vunpack.c.l.b16 %v959
    %v1031 = vunpack.c.l.b16 %v960
    %v1032 = vunpack.c.l.b16 %v961
    %v1033 = vunpack.c.l.b16 %v962
    %v1034 = vunpack.c.l.b16 %v963
    %v1035 = vunpack.c.l.b16 %v964
    %v1036 = vunpack.c.l.b16 %v965
    %v1037 = vunpack.c.l.b16 %v966
    %v1038 = vunpack.c.l.b16 %v967
    %v1039 = vunpack.c.l.b16 %v968
    %v1040 = vunpack.c.l.b16 %v969
    %v1041 = vunpack.c.l.b16 %v970
    %v1042 = vunpack.c.l.b16 %v971
    %v1043 = vunpack.c.l.b16 %v972
    %v1044 = vunpack.c.l.b16 %v973
    %v1045 = vunpack.c.l.b16 %v974
    %v1046 = vunpack.c.l.b16 %v975
    %v1047 = vunpack.c.l.b16 %v976
    %v1048 = vunpack.c.l.b16 %v977
    %v1049 = vunpack.c.l.b16 %v978
    %v1050 = vunpack.c.l.b16 %v979
    %v1051 = vunpack.c.l.b16 %v980
    %v1052 = vunpack.c.l.b16 %v981
    %v1053 = vunpack.c.l.b16 %v982
    %v1054 = vunpack.c.l.b16 %v983
    %v1055 = vpack.c.b16 %v1024, %v1023
    %v1056 = vpack.c.b16 %v1026, %v1025
    %v1057 = vpack.c.b16 %v1028, %v1027
    %v1058 = vpack.c.b16 %v1030, %v1029
    %v1059 = vpack.c.b16 %v1032, %v1031
    %v1060 = vpack.c.b16 %v1034, %v1033
    %v1061 = vpack.c.b16 %v1036, %v1035
    %v1062 = vpack.c.b16 %v1038, %v1037
    %v1063 = vpack.c.b16 %v1040, %v1039
    %v1064 = vpack.c.b16 %v1042, %v1041
    %v1065 = vpack.c.b16 %v1044, %v1043
    %v1066 = vpack.c.b16 %v1046, %v1045
    %v1067 = vpack.c.b16 %v1048, %v1047
    %v1068 = vpack.c.b16 %v1050, %v1049
    %v1069 = vpack.c.b16 %v1052, %v1051
    %v1070 = vpack.c.b16 %v1054, %v1053
    %1087 = vmatprep.subr.bf16.mxu0 0
    %1088 = vmatpush1.bf16.msra.mxu0 %v1055
    %1089 = vmatprep.subr.bf16.mxu0 0
    %1090 = vmatpush1.bf16.msra.mxu0 %v1056
    %1091 = vmatprep.subr.bf16.mxu0 0
    %1092 = vmatpush1.bf16.msra.mxu0 %v1057
    %1093 = vmatprep.subr.bf16.mxu0 0
    %1094 = vmatpush1.bf16.msra.mxu0 %v1058
    %1095 = vmatprep.subr.bf16.mxu0 0
    %1096 = vmatpush1.bf16.msra.mxu0 %v1059
    %1097 = vmatprep.subr.bf16.mxu0 0
    %1098 = vmatpush1.bf16.msra.mxu0 %v1060
    %1099 = vmatprep.subr.bf16.mxu0 0
    %1100 = vmatpush1.bf16.msra.mxu0 %v1061
    %1101 = vmatprep.subr.bf16.mxu0 0
    %1102 = vmatpush1.bf16.msra.mxu0 %v1062
    %1103 = vmatprep.subr.bf16.mxu0 0
    %1104 = vmatpush1.bf16.msra.mxu0 %v1063
    %1105 = vmatprep.subr.bf16.mxu0 0
    %1106 = vmatpush1.bf16.msra.mxu0 %v1064
    %1107 = vmatprep.subr.bf16.mxu0 0
    %1108 = vmatpush1.bf16.msra.mxu0 %v1065
    %1109 = vmatprep.subr.bf16.mxu0 0
    %1110 = vmatpush1.bf16.msra.mxu0 %v1066
    %1111 = vmatprep.subr.bf16.mxu0 0
    %1112 = vmatpush1.bf16.msra.mxu0 %v1067
    %1113 = vmatprep.subr.bf16.mxu0 0
    %1114 = vmatpush1.bf16.msra.mxu0 %v1068
    %1115 = vmatprep.subr.bf16.mxu0 0
    %1116 = vmatpush1.bf16.msra.mxu0 %v1069
    %1117 = vmatprep.subr.bf16.mxu0 0
    %1118 = vmatpush1.bf16.msra.mxu0 %v1070
    %1119 = vmatprep.mubr.bf16.mxu0 %v951
    %1120 = vmatmul.mubr.bf16.gmra.mrb[0].mxu0 %v950
    %v1121 = vpop.f32.mrb[0].mxu0
    %v1122 = vadd.f32 %v989, %v1121
    %v1123 = vpop.f32.mrb[0].mxu0
    %v1124 = vpop.f32.mrb[0].mxu0
    %v1125 = vpop.f32.mrb[0].mxu0
    %1126 = vdwg.mxu0
    %vm1127 = vcmask 64512
    %1128 = vst.msk [vmem:[#allocation5] sm:$0xff] %vm1127, %v1122
    // Predicated region
    $region38: #{tpu_custom_call.1} parent=1 // pred_check
      _
    $region39: #{tpu_custom_call.1} parent=1 // pred_check_branch
      %1130 = sbr.rel (0) target = $region41
    $region40: #{tpu_custom_call.1} parent=1 // pred_region
      %s1132 = ssub.s32 128, 32
      %1133 = vsyncadd [#allocation4], %s1132
      %s1134 = sshll.u32 [#allocation5], 4
      %s1135 = int_to_ptr.vmem [resolvable:$true] %s1134
      %1140 = dma.vmem_to_hbm [thread:$0]  %s1135, 32, %s8, [#allocation4], 32, 32, 2
    $region41: #{tpu_custom_call.1} parent=1 // pred_fallthru
      _
    // Predicated region
    $region42: #{tpu_custom_call.1} parent=1 // pred_check
      _
    $region43: #{tpu_custom_call.1} parent=1 // pred_check_branch
      %1142 = sbr.rel (0) target = $region45
    $region44: #{tpu_custom_call.1} parent=1 // pred_region
      %1143 = dma.done [#allocation4], 128
    $region45: #{tpu_custom_call.1} parent=1 // pred_fallthru
      _
    %1144 = vsyncpa [#allocation3], 1
    %1145 = vsyncpa [#allocation4], 1

</llo_original>
